<compile_context>
chip_gen: v7x
topology: tpu7x:2x2x1
jax: 0.10.0
libtpu: 0.0.40
codegen_flags: <defaults>
</compile_context>

<pallas_src>
import math
import jax
import jax.numpy as jnp
from jax.experimental import pallas as pl
from jax.experimental.pallas import tpu as pltpu

LANE = 128


def _round_up(n, m):
    return ((n + m - 1) // m) * m


def _pad_to(arr, shape):
    pads = [(0, s - d) for d, s in zip(arr.shape, shape)]
    return jnp.pad(arr, pads)


def dqn_kernel(x_ref, w1_ref, b1_ref, w2_ref, b2_ref, w3_ref, b3_ref, o_ref):
    # fc1: bf16 MXU matmul, f32 accumulate, f32 bias + ReLU, cast back to bf16.
    h1 = jnp.dot(x_ref[...], w1_ref[...], preferred_element_type=jnp.float32)
    h1 = jnp.maximum(h1 + b1_ref[...], 0.0).astype(jnp.bfloat16)
    # fc2
    h2 = jnp.dot(h1, w2_ref[...], preferred_element_type=jnp.float32)
    h2 = jnp.maximum(h2 + b2_ref[...], 0.0).astype(jnp.bfloat16)
    # out (no activation); o_ref is f32 so no cast needed.
    o = jnp.dot(h2, w3_ref[...], preferred_element_type=jnp.float32)
    o_ref[...] = o + b3_ref[...]


def dqn_forward(x, params, *, block_b=128):
    """Fused MLP forward. Pads lane dims to 128 and tiles the batch by block_b."""
    w1, b1, w2, b2, w3, b3 = params
    B, n_in = x.shape
    nh1, nh2, n_out = w1.shape[1], w2.shape[1], w3.shape[1]

    # Lane-align hidden / output widths (zero padding is exact: padded hidden
    # units get zero weights + zero bias -> ReLU(0) = 0 -> contribute nothing).
    nh1_p = _round_up(nh1, LANE)
    nh2_p = _round_up(nh2, LANE)
    n_out_p = _round_up(n_out, LANE)
    B_p = _round_up(max(B, 1), block_b)

    x_p = _pad_to(x, (B_p, n_in)).astype(jnp.bfloat16)
    w1_p = _pad_to(w1, (n_in, nh1_p)).astype(jnp.bfloat16)
    b1_p = _pad_to(b1, (1, nh1_p))
    w2_p = _pad_to(w2, (nh1_p, nh2_p)).astype(jnp.bfloat16)
    b2_p = _pad_to(b2, (1, nh2_p))
    w3_p = _pad_to(w3, (nh2_p, n_out_p)).astype(jnp.bfloat16)
    b3_p = _pad_to(b3, (1, n_out_p))

    grid = (B_p // block_b,)

    def const_spec(arr):
        # Whole (tiny) array resident in VMEM, same block for every grid step.
        nd = arr.ndim
        return pl.BlockSpec(arr.shape, lambda i, _nd=nd: (0,) * _nd)

    out = pl.pallas_call(
        dqn_kernel,
        out_shape=jax.ShapeDtypeStruct((B_p, n_out_p), jnp.float32),
        grid=grid,
        in_specs=[
            pl.BlockSpec((block_b, n_in), lambda i: (i, 0)),   # x: tiled over batch
            const_spec(w1_p), const_spec(b1_p),
            const_spec(w2_p), const_spec(b2_p),
            const_spec(w3_p), const_spec(b3_p),
        ],
        out_specs=pl.BlockSpec((block_b, n_out_p), lambda i: (i, 0)),
        compiler_params=pltpu.CompilerParams(
            dimension_semantics=("parallel",)),  # lets v7x shard batch across 2 TCs
    )(x_p, w1_p, b1_p, w2_p, b2_p, w3_p, b3_p)

    return out[:B, :n_out]


def init_linear(key, fan_in, fan_out):
    # PyTorch nn.Linear default init: U(-1/sqrt(fan_in), 1/sqrt(fan_in))
    kw, kb = jax.random.split(key)
    bound = 1.0 / math.sqrt(fan_in)
    w = jax.random.uniform(kw, (fan_in, fan_out), jnp.float32, -bound, bound)
    b = jax.random.uniform(kb, (1, fan_out), jnp.float32, -bound, bound)
    return w, b


def make_dqn_params(key, n_skus, n_actions):
    nh1 = round(math.sqrt((n_actions + 2) * n_skus) + 2 * math.sqrt(n_skus / n_actions))
    nh2 = round(n_actions * math.sqrt(n_skus / (n_actions + 2)))
    k1, k2, k3 = jax.random.split(key, 3)
    w1, b1 = init_linear(k1, n_skus, nh1)
    w2, b2 = init_linear(k2, nh1, nh2)
    w3, b3 = init_linear(k3, nh2, n_actions)
    return (w1, b1, w2, b2, w3, b3)


def dqn_reference(x, params):
    # Mirrors the kernel's precision: bf16 matmul inputs, f32 accumulation.
    w1, b1, w2, b2, w3, b3 = params

    def dot_bf16(a, w):
        return jnp.dot(a.astype(jnp.bfloat16), w.astype(jnp.bfloat16),
                       preferred_element_type=jnp.float32)

    h1 = jnp.maximum(dot_bf16(x, w1) + b1, 0.0)
    h2 = jnp.maximum(dot_bf16(h1, w2) + b2, 0.0)
    return dot_bf16(h2, w3) + b3


if __name__ == "__main__":
    n_skus = 64
    n_actions = 8

    key = jax.random.PRNGKey(0)
    kp, kx1, kx2 = jax.random.split(key, 3)
    params = make_dqn_params(kp, n_skus, n_actions)

    # Small batch (as in the spec's usage): single grid step, padded to one tile.
    x_small = jax.random.normal(kx1, (2, n_skus), jnp.float32)
    out_small = jax.block_until_ready(dqn_forward(x_small, params))
    ref_small = dqn_reference(x_small, params)
    assert out_small.shape == (2, n_actions)
    assert jnp.allclose(out_small, ref_small, atol=1e-2, rtol=1e-2)

    # Larger batch exercises the multi-step batch grid + tail padding.
    x_big = jax.random.normal(kx2, (320, n_skus), jnp.float32)
    out_big = jax.block_until_ready(dqn_forward(x_big, params, block_b=128))
    ref_big = dqn_reference(x_big, params)
    assert out_big.shape == (320, n_actions)
    assert jnp.allclose(out_big, ref_big, atol=1e-2, rtol=1e-2)

    print("KERNEL_OK")
</pallas_src>

<mosaic_0001>
module attributes {stable_mosaic.version = 11 : i64} {
  func.func @dqn_kernel(%arg0: i32, %arg1: memref<128x64xbf16, #tpu.memory_space<vmem>>, %arg2: memref<64x128xbf16, #tpu.memory_space<vmem>>, %arg3: memref<1x128xf32, #tpu.memory_space<vmem>>, %arg4: memref<128x128xbf16, #tpu.memory_space<vmem>>, %arg5: memref<1x128xf32, #tpu.memory_space<vmem>>, %arg6: memref<128x128xbf16, #tpu.memory_space<vmem>>, %arg7: memref<1x128xf32, #tpu.memory_space<vmem>>, %arg8: memref<128x128xf32, #tpu.memory_space<vmem>>) attributes {dimension_semantics = [#tpu.dimension_semantics<parallel>], iteration_bounds = array<i64: 1>, scalar_prefetch = 0 : i64, scratch_operands = 0 : i64, tpu.core_type = #tpu.core_type<tc>, window_params = [{transform_indices = @transform_0, window_bounds = array<i64: 128, 64>}, {pipeline_mode = #tpu.pipeline_mode<synchronous>, transform_indices = @transform_1, window_bounds = array<i64: 64, 128>}, {pipeline_mode = #tpu.pipeline_mode<synchronous>, transform_indices = @transform_2, window_bounds = array<i64: 1, 128>}, {pipeline_mode = #tpu.pipeline_mode<synchronous>, transform_indices = @transform_3, window_bounds = array<i64: 128, 128>}, {pipeline_mode = #tpu.pipeline_mode<synchronous>, transform_indices = @transform_4, window_bounds = array<i64: 1, 128>}, {pipeline_mode = #tpu.pipeline_mode<synchronous>, transform_indices = @transform_5, window_bounds = array<i64: 128, 128>}, {pipeline_mode = #tpu.pipeline_mode<synchronous>, transform_indices = @transform_6, window_bounds = array<i64: 1, 128>}, {transform_indices = @transform_7, window_bounds = array<i64: 128, 128>}]} {
    %c0 = arith.constant 0 : index
    %c0_0 = arith.constant 0 : index
    %0 = vector.load %arg1[%c0, %c0_0] : memref<128x64xbf16, #tpu.memory_space<vmem>>, vector<128x64xbf16>
    %c0_1 = arith.constant 0 : index
    %c0_2 = arith.constant 0 : index
    %1 = vector.load %arg2[%c0_1, %c0_2] : memref<64x128xbf16, #tpu.memory_space<vmem>>, vector<64x128xbf16>
    %cst = arith.constant dense<0.000000e+00> : vector<128x128xf32>
    %2 = tpu.matmul %0, %1, %cst {dimension_numbers = #tpu.dot_dimension_numbers<[1], [0], [0], [1], [0, 0, 1, 1], [], []>} : vector<128x64xbf16>, vector<64x128xbf16>, vector<128x128xf32> -> vector<128x128xf32>
    %c0_3 = arith.constant 0 : index
    %c0_4 = arith.constant 0 : index
    %3 = vector.load %arg3[%c0_3, %c0_4] : memref<1x128xf32, #tpu.memory_space<vmem>>, vector<1x128xf32>
    %4 = vector.broadcast %3 : vector<1x128xf32> to vector<128x128xf32>
    %5 = arith.addf %2, %4 : vector<128x128xf32>
    %cst_5 = arith.constant 0.000000e+00 : f32
    %6 = vector.broadcast %cst_5 : f32 to vector<128x128xf32>
    %7 = arith.maximumf %5, %6 : vector<128x128xf32>
    %8 = arith.truncf %7 : vector<128x128xf32> to vector<128x128xbf16>
    %c0_6 = arith.constant 0 : index
    %c0_7 = arith.constant 0 : index
    %9 = vector.load %arg4[%c0_6, %c0_7] : memref<128x128xbf16, #tpu.memory_space<vmem>>, vector<128x128xbf16>
    %cst_8 = arith.constant dense<0.000000e+00> : vector<128x128xf32>
    %10 = tpu.matmul %8, %9, %cst_8 {dimension_numbers = #tpu.dot_dimension_numbers<[1], [0], [0], [1], [0, 0, 1, 1], [], []>} : vector<128x128xbf16>, vector<128x128xbf16>, vector<128x128xf32> -> vector<128x128xf32>
    %c0_9 = arith.constant 0 : index
    %c0_10 = arith.constant 0 : index
    %11 = vector.load %arg5[%c0_9, %c0_10] : memref<1x128xf32, #tpu.memory_space<vmem>>, vector<1x128xf32>
    %12 = vector.broadcast %11 : vector<1x128xf32> to vector<128x128xf32>
    %13 = arith.addf %10, %12 : vector<128x128xf32>
    %cst_11 = arith.constant 0.000000e+00 : f32
    %14 = vector.broadcast %cst_11 : f32 to vector<128x128xf32>
    %15 = arith.maximumf %13, %14 : vector<128x128xf32>
    %16 = arith.truncf %15 : vector<128x128xf32> to vector<128x128xbf16>
    %c0_12 = arith.constant 0 : index
    %c0_13 = arith.constant 0 : index
    %17 = vector.load %arg6[%c0_12, %c0_13] : memref<128x128xbf16, #tpu.memory_space<vmem>>, vector<128x128xbf16>
    %cst_14 = arith.constant dense<0.000000e+00> : vector<128x128xf32>
    %18 = tpu.matmul %16, %17, %cst_14 {dimension_numbers = #tpu.dot_dimension_numbers<[1], [0], [0], [1], [0, 0, 1, 1], [], []>} : vector<128x128xbf16>, vector<128x128xbf16>, vector<128x128xf32> -> vector<128x128xf32>
    %c0_15 = arith.constant 0 : index
    %c0_16 = arith.constant 0 : index
    %19 = vector.load %arg7[%c0_15, %c0_16] : memref<1x128xf32, #tpu.memory_space<vmem>>, vector<1x128xf32>
    %20 = vector.broadcast %19 : vector<1x128xf32> to vector<128x128xf32>
    %21 = arith.addf %18, %20 : vector<128x128xf32>
    %c0_17 = arith.constant 0 : index
    %c0_18 = arith.constant 0 : index
    %22 = vector.load %arg8[%c0_17, %c0_18] : memref<128x128xf32, #tpu.memory_space<vmem>>, vector<128x128xf32>
    tpu.vector_store %arg8[%c0_17, %c0_18], %21 {strides = array<i32>} : memref<128x128xf32, #tpu.memory_space<vmem>>, vector<128x128xf32>,
    return
  }
  func.func @transform_0(%arg0: i32) -> (i32, i32) {
    %c0_i32 = arith.constant 0 : i32
    %c0_i32_0 = arith.constant 0 : i32
    return %arg0, %c0_i32 : i32, i32
  }
  func.func @transform_1(%arg0: i32) -> (i32, i32) {
    %c0_i32 = arith.constant 0 : i32
    %c0_i32_0 = arith.constant 0 : i32
    %c0_i32_1 = arith.constant 0 : i32
    return %c0_i32, %c0_i32_0 : i32, i32
  }
  func.func @transform_2(%arg0: i32) -> (i32, i32) {
    %c0_i32 = arith.constant 0 : i32
    %c0_i32_0 = arith.constant 0 : i32
    %c0_i32_1 = arith.constant 0 : i32
    return %c0_i32, %c0_i32_0 : i32, i32
  }
  func.func @transform_3(%arg0: i32) -> (i32, i32) {
    %c0_i32 = arith.constant 0 : i32
    %c0_i32_0 = arith.constant 0 : i32
    %c0_i32_1 = arith.constant 0 : i32
    return %c0_i32, %c0_i32_0 : i32, i32
  }
  func.func @transform_4(%arg0: i32) -> (i32, i32) {
    %c0_i32 = arith.constant 0 : i32
    %c0_i32_0 = arith.constant 0 : i32
    %c0_i32_1 = arith.constant 0 : i32
    return %c0_i32, %c0_i32_0 : i32, i32
  }
  func.func @transform_5(%arg0: i32) -> (i32, i32) {
    %c0_i32 = arith.constant 0 : i32
    %c0_i32_0 = arith.constant 0 : i32
    %c0_i32_1 = arith.constant 0 : i32
    return %c0_i32, %c0_i32_0 : i32, i32
  }
  func.func @transform_6(%arg0: i32) -> (i32, i32) {
    %c0_i32 = arith.constant 0 : i32
    %c0_i32_0 = arith.constant 0 : i32
    %c0_i32_1 = arith.constant 0 : i32
    return %c0_i32, %c0_i32_0 : i32, i32
  }
  func.func @transform_7(%arg0: i32) -> (i32, i32) {
    %c0_i32 = arith.constant 0 : i32
    %c0_i32_0 = arith.constant 0 : i32
    return %arg0, %c0_i32 : i32, i32
  }
}

</mosaic_0001>

<llo_original>
// kernel: tpu_custom_call.1
$region0: #{tpu_custom_call.1}
  #allocation0 [shape = 'u32[]', space=smem, size = 0x4, offset = 0x4, fixed_abs, tag = 'smem constant byte address 0x4 - core index']
  #allocation1 [shape = 'u32[144,128]{1,0:T(1,128)}', space=vmem, size = 0x12000, scoped, tag = 'internal scratch']
  %s0 = inlined_call_operand.vmem [shape: bf16[128,64], index: 0, kind: input, shape index: {}]
  %s1 = inlined_call_operand.vmem [shape: bf16[64,128], index: 1, kind: input, shape index: {}]
  %s2 = inlined_call_operand.vmem [shape: f32[1,128], index: 2, kind: input, shape index: {}]
  %s3 = inlined_call_operand.vmem [shape: bf16[128,128], index: 3, kind: input, shape index: {}]
  %s4 = inlined_call_operand.vmem [shape: f32[1,128], index: 4, kind: input, shape index: {}]
  %s5 = inlined_call_operand.hbm [shape: bf16[128,128], index: 5, kind: input, shape index: {}]
  %s6 = inlined_call_operand.vmem [shape: f32[1,128], index: 6, kind: input, shape index: {}]
  %s7 = inlined_call_operand.hbm [shape: f32[128,128], index: 7, kind: output, shape index: {}]
  %s8 = sld [smem:[#allocation0]]
  $region42: #{tpu_custom_call.1} parent=0
    _
  %s10 = ssub.s32 1, %s8
  %s11 = scalar_select 0, %s10, %s8
  $region1: #{tpu_custom_call.1} parent=0
    #allocation2 [shape = 'u8[32768]{0}', space=vmem, size = 0x8000, scoped, tag = 'input window, operand 5, single buffered']
    #allocation3 [shape = 's32[1]{0}', space=sflag, size = 0x4, scoped, tag = 'scoped memory for tpu_custom_call.1']
    #allocation4 [shape = 's32[1]{0}', space=sflag, size = 0x4, scoped, tag = 'scoped memory for tpu_custom_call.1']
    #allocation5 [shape = 'u8[65536]{0}', space=vmem, size = 0x10000, scoped, tag = 'output window, operand 0, single buffered']
    %12 = vsyncpa [#allocation3], 0
    %13 = vsyncpa [#allocation4], 0
    // Predicated region
    $region2: #{tpu_custom_call.1} parent=1 // pred_check
      _
    $region3: #{tpu_custom_call.1} parent=1 // pred_check_branch
      %15 = sbr.rel (0) target = $region5
    $region4: #{tpu_custom_call.1} parent=1 // pred_region
      _
    $region5: #{tpu_custom_call.1} parent=1 // pred_fallthru
      _
    // Predicated region
    $region6: #{tpu_custom_call.1} parent=1 // pred_check
      _
    $region7: #{tpu_custom_call.1} parent=1 // pred_check_branch
      %17 = sbr.rel (0) target = $region9
    $region8: #{tpu_custom_call.1} parent=1 // pred_region
      _
    $region9: #{tpu_custom_call.1} parent=1 // pred_fallthru
      _
    // Predicated region
    $region10: #{tpu_custom_call.1} parent=1 // pred_check
      _
    $region11: #{tpu_custom_call.1} parent=1 // pred_check_branch
      %19 = sbr.rel (0) target = $region13
    $region12: #{tpu_custom_call.1} parent=1 // pred_region
      _
    $region13: #{tpu_custom_call.1} parent=1 // pred_fallthru
      _
    // Predicated region
    $region14: #{tpu_custom_call.1} parent=1 // pred_check
      _
    $region15: #{tpu_custom_call.1} parent=1 // pred_check_branch
      %21 = sbr.rel (0) target = $region17
    $region16: #{tpu_custom_call.1} parent=1 // pred_region
      _
    $region17: #{tpu_custom_call.1} parent=1 // pred_fallthru
      _
    // Predicated region
    $region18: #{tpu_custom_call.1} parent=1 // pred_check
      _
    $region19: #{tpu_custom_call.1} parent=1 // pred_check_branch
      %23 = sbr.rel (0) target = $region21
    $region20: #{tpu_custom_call.1} parent=1 // pred_region
      _
    $region21: #{tpu_custom_call.1} parent=1 // pred_fallthru
      _
    // Predicated region
    $region22: #{tpu_custom_call.1} parent=1 // pred_check
      _
    $region23: #{tpu_custom_call.1} parent=1 // pred_check_branch
      %25 = sbr.rel (0) target = $region25
    $region24: #{tpu_custom_call.1} parent=1 // pred_region
      %s27 = ssub.s32 1024, 1024
      %28 = vsyncadd [#allocation3], %s27
      %s29 = sshll.u32 [#allocation2], 4
      %s30 = int_to_ptr.vmem [resolvable:$true] %s29
      %35 = dma.hbm_to_vmem [thread:$0]  %s5, 1024, %s30, [#allocation3], 64, 64, 4
    $region25: #{tpu_custom_call.1} parent=1 // pred_fallthru
      _
    // Predicated region
    $region26: #{tpu_custom_call.1} parent=1 // pred_check
      _
    $region27: #{tpu_custom_call.1} parent=1 // pred_check_branch
      %37 = sbr.rel (0) target = $region29
    $region28: #{tpu_custom_call.1} parent=1 // pred_region
      _
    $region29: #{tpu_custom_call.1} parent=1 // pred_fallthru
      _
    // Predicated region
    $region30: #{tpu_custom_call.1} parent=1 // pred_check
      _
    $region31: #{tpu_custom_call.1} parent=1 // pred_check_branch
      %39 = sbr.rel (0) target = $region33
    $region32: #{tpu_custom_call.1} parent=1 // pred_region
      %40 = dma.done [#allocation3], 1024
    $region33: #{tpu_custom_call.1} parent=1 // pred_fallthru
      _
    %v42 = vld [vmem:[%s0] sm:$0xf]
    %v43 = vld [vmem:[%s0 + $0x4] sm:$0xf]
    %v44 = vld [vmem:[%s0 + $0x8] sm:$0xf]
    %v45 = vld [vmem:[%s0 + $0xc] sm:$0xf]
    %v46 = vld [vmem:[%s0 + $0x10] sm:$0xf]
    %v47 = vld [vmem:[%s0 + $0x14] sm:$0xf]
    %v48 = vld [vmem:[%s0 + $0x18] sm:$0xf]
    %v49 = vld [vmem:[%s0 + $0x1c] sm:$0xf]
    %v50 = vld [vmem:[%s0 + $0x20] sm:$0xf]
    %v51 = vld [vmem:[%s0 + $0x24] sm:$0xf]
    %v52 = vld [vmem:[%s0 + $0x28] sm:$0xf]
    %v53 = vld [vmem:[%s0 + $0x2c] sm:$0xf]
    %v54 = vld [vmem:[%s0 + $0x30] sm:$0xf]
    %v55 = vld [vmem:[%s0 + $0x34] sm:$0xf]
    %v56 = vld [vmem:[%s0 + $0x38] sm:$0xf]
    %v57 = vld [vmem:[%s0 + $0x3c] sm:$0xf]
    %v58 = vld [vmem:[%s1] sm:$0xf]
    %v59 = vld [vmem:[%s1 + $0x4] sm:$0xf]
    %v60 = vld [vmem:[%s1 + $0x8] sm:$0xf]
    %v61 = vld [vmem:[%s1 + $0xc] sm:$0xf]
    %v62 = vld [vmem:[%s1 + $0x10] sm:$0xf]
    %v63 = vld [vmem:[%s1 + $0x14] sm:$0xf]
    %v64 = vld [vmem:[%s1 + $0x18] sm:$0xf]
    %v65 = vld [vmem:[%s1 + $0x1c] sm:$0xf]
    %v66 = vld [vmem:[%s2] sm:$0x1]
    %v68 = vlaneseq
    %v69 = vshrl.u32 %v68, 7
    %v70 = vsub.s32 0, %v69
    %v71 = vrot.slane %v66, %v70
    %v89 = vunpack.c.l.b16 %v42
    %v90 = vunpack.c.l.b16 %v43
    %v91 = vunpack.c.l.b16 %v44
    %v92 = vunpack.c.l.b16 %v45
    %v93 = vunpack.c.l.b16 %v46
    %v94 = vunpack.c.l.b16 %v47
    %v95 = vunpack.c.l.b16 %v48
    %v96 = vunpack.c.l.b16 %v49
    %v97 = vunpack.c.l.b16 %v50
    %v98 = vunpack.c.l.b16 %v51
    %v99 = vunpack.c.l.b16 %v52
    %v100 = vunpack.c.l.b16 %v53
    %v101 = vunpack.c.l.b16 %v54
    %v102 = vunpack.c.l.b16 %v55
    %v103 = vunpack.c.l.b16 %v56
    %v104 = vunpack.c.l.b16 %v57
    %v105 = vpack.c.b16 %v90, %v89
    %v106 = vpack.c.b16 %v92, %v91
    %v107 = vpack.c.b16 %v94, %v93
    %v108 = vpack.c.b16 %v96, %v95
    %v109 = vpack.c.b16 %v98, %v97
    %v110 = vpack.c.b16 %v100, %v99
    %v111 = vpack.c.b16 %v102, %v101
    %v112 = vpack.c.b16 %v104, %v103
    %v121 = vunpack.c.l.b16 %v58
    %v122 = vunpack.c.l.b16 %v59
    %v123 = vunpack.c.l.b16 %v60
    %v124 = vunpack.c.l.b16 %v61
    %v125 = vunpack.c.l.b16 %v62
    %v126 = vunpack.c.l.b16 %v63
    %v127 = vunpack.c.l.b16 %v64
    %v128 = vunpack.c.l.b16 %v65
    %v129 = vpack.c.b16 %v122, %v121
    %v130 = vpack.c.b16 %v124, %v123
    %v131 = vpack.c.b16 %v126, %v125
    %v132 = vpack.c.b16 %v128, %v127
    %vm137 = vcmask 523264
    %v139 = vsel %vm137, %v105, 0
    %v142 = vsel %vm137, %v106, 0
    %v145 = vsel %vm137, %v107, 0
    %v148 = vsel %vm137, %v108, 0
    %v151 = vsel %vm137, %v109, 0
    %v154 = vsel %vm137, %v110, 0
    %v157 = vsel %vm137, %v111, 0
    %v160 = vsel %vm137, %v112, 0
    %162 = vmatprep.subr.bf16.mxu0 0
    %163 = vmatpush1.bf16.msra.mxu0 %v129
    %164 = vmatprep.subr.bf16.mxu0 0
    %165 = vmatpush1.bf16.msra.mxu0 %v130
    %166 = vmatprep.subr.bf16.mxu0 0
    %167 = vmatpush1.bf16.msra.mxu0 %v131
    %168 = vmatprep.subr.bf16.mxu0 0
    %169 = vmatpush1.bf16.msra.mxu0 %v132
    %170 = vmatprep.subr.bf16.mxu0 0
    %171 = vmatpush1.bf16.msra.mxu0 0
    %172 = vmatprep.subr.bf16.mxu0 0
    %173 = vmatpush1.bf16.msra.mxu0 0
    %174 = vmatprep.subr.bf16.mxu0 0
    %175 = vmatpush1.bf16.msra.mxu0 0
    %176 = vmatprep.subr.bf16.mxu0 0
    %177 = vmatpush1.bf16.msra.mxu0 0
    %178 = vmatprep.subr.bf16.mxu0 0
    %179 = vmatpush1.bf16.msra.mxu0 0
    %180 = vmatprep.subr.bf16.mxu0 0
    %181 = vmatpush1.bf16.msra.mxu0 0
    %182 = vmatprep.subr.bf16.mxu0 0
    %183 = vmatpush1.bf16.msra.mxu0 0
    %184 = vmatprep.subr.bf16.mxu0 0
    %185 = vmatpush1.bf16.msra.mxu0 0
    %186 = vmatprep.subr.bf16.mxu0 0
    %187 = vmatpush1.bf16.msra.mxu0 0
    %188 = vmatprep.subr.bf16.mxu0 0
    %189 = vmatpush1.bf16.msra.mxu0 0
    %190 = vmatprep.subr.bf16.mxu0 0
    %191 = vmatpush1.bf16.msra.mxu0 0
    %192 = vmatprep.subr.bf16.mxu0 0
    %193 = vmatpush1.bf16.msra.mxu0 0
    %194 = vmatprep.mubr.bf16.mxu0 0
    %195 = vmatmul.mubr.bf16.gmra.mrb[0].mxu0 %v139
    %v196 = vpop.f32.mrb[0].mxu0
    %v197 = vadd.f32 %v71, %v196
    %v198 = vpop.f32.mrb[0].mxu0
    %v199 = vpop.f32.mrb[0].mxu0
    %v200 = vadd.f32 %v71, %v199
    %v201 = vpop.f32.mrb[0].mxu0
    %202 = vmatprep.mubr.bf16.mxu0 0
    %203 = vmatmul.mubr.bf16.gmra.mrb[0].mxu0 %v142
    %v204 = vpop.f32.mrb[0].mxu0
    %v205 = vadd.f32 %v71, %v204
    %v206 = vpop.f32.mrb[0].mxu0
    %v207 = vpop.f32.mrb[0].mxu0
    %v208 = vadd.f32 %v71, %v207
    %v209 = vpop.f32.mrb[0].mxu0
    %210 = vmatprep.mubr.bf16.mxu0 0
    %211 = vmatmul.mubr.bf16.gmra.mrb[0].mxu0 %v145
    %v212 = vpop.f32.mrb[0].mxu0
    %v213 = vadd.f32 %v71, %v212
    %v214 = vpop.f32.mrb[0].mxu0
    %v215 = vpop.f32.mrb[0].mxu0
    %v216 = vadd.f32 %v71, %v215
    %v217 = vpop.f32.mrb[0].mxu0
    %218 = vmatprep.mubr.bf16.mxu0 0
    %219 = vmatmul.mubr.bf16.gmra.mrb[0].mxu0 %v148
    %v220 = vpop.f32.mrb[0].mxu0
    %v221 = vadd.f32 %v71, %v220
    %v222 = vpop.f32.mrb[0].mxu0
    %v223 = vpop.f32.mrb[0].mxu0
    %v224 = vadd.f32 %v71, %v223
    %v225 = vpop.f32.mrb[0].mxu0
    %226 = vmatprep.mubr.bf16.mxu0 0
    %227 = vmatmul.mubr.bf16.gmra.mrb[0].mxu0 %v151
    %v228 = vpop.f32.mrb[0].mxu0
    %v229 = vadd.f32 %v71, %v228
    %v230 = vpop.f32.mrb[0].mxu0
    %v231 = vpop.f32.mrb[0].mxu0
    %v232 = vadd.f32 %v71, %v231
    %v233 = vpop.f32.mrb[0].mxu0
    %234 = vmatprep.mubr.bf16.mxu0 0
    %235 = vmatmul.mubr.bf16.gmra.mrb[0].mxu0 %v154
    %v236 = vpop.f32.mrb[0].mxu0
    %v237 = vadd.f32 %v71, %v236
    %v238 = vpop.f32.mrb[0].mxu0
    %v239 = vpop.f32.mrb[0].mxu0
    %v240 = vadd.f32 %v71, %v239
    %v241 = vpop.f32.mrb[0].mxu0
    %242 = vmatprep.mubr.bf16.mxu0 0
    %243 = vmatmul.mubr.bf16.gmra.mrb[0].mxu0 %v157
    %v244 = vpop.f32.mrb[0].mxu0
    %v245 = vadd.f32 %v71, %v244
    %v246 = vpop.f32.mrb[0].mxu0
    %v247 = vpop.f32.mrb[0].mxu0
    %v248 = vadd.f32 %v71, %v247
    %v249 = vpop.f32.mrb[0].mxu0
    %250 = vmatprep.mubr.bf16.mxu0 0
    %251 = vmatmul.mubr.bf16.gmra.mrb[0].mxu0 %v160
    %v252 = vpop.f32.mrb[0].mxu0
    %v253 = vadd.f32 %v71, %v252
    %v254 = vpop.f32.mrb[0].mxu0
    %v255 = vpop.f32.mrb[0].mxu0
    %v256 = vadd.f32 %v71, %v255
    %v257 = vpop.f32.mrb[0].mxu0
    %258 = vdwg.mxu0
    %v259 = vmax.f32 %v197, 0.0
    %v260 = vmax.f32 %v200, 0.0
    %v261 = vmax.f32 %v205, 0.0
    %v262 = vmax.f32 %v208, 0.0
    %v263 = vmax.f32 %v213, 0.0
    %v264 = vmax.f32 %v216, 0.0
    %v265 = vmax.f32 %v221, 0.0
    %v266 = vmax.f32 %v224, 0.0
    %v267 = vmax.f32 %v229, 0.0
    %v268 = vmax.f32 %v232, 0.0
    %v269 = vmax.f32 %v237, 0.0
    %v270 = vmax.f32 %v240, 0.0
    %v271 = vmax.f32 %v245, 0.0
    %v272 = vmax.f32 %v248, 0.0
    %v273 = vmax.f32 %v253, 0.0
    %v274 = vmax.f32 %v256, 0.0
    %v275 = vpack.c.bf16 %v260, %v259
    %v276 = vpack.c.bf16 %v262, %v261
    %v277 = vpack.c.bf16 %v264, %v263
    %v278 = vpack.c.bf16 %v266, %v265
    %v279 = vpack.c.bf16 %v268, %v267
    %v280 = vpack.c.bf16 %v270, %v269
    %v281 = vpack.c.bf16 %v272, %v271
    %v282 = vpack.c.bf16 %v274, %v273
    %v283 = vld [vmem:[%s3] sm:$0xf]
    %v284 = vld [vmem:[%s3 + $0x4] sm:$0xf]
    %v285 = vld [vmem:[%s3 + $0x8] sm:$0xf]
    %v286 = vld [vmem:[%s3 + $0xc] sm:$0xf]
    %v287 = vld [vmem:[%s3 + $0x10] sm:$0xf]
    %v288 = vld [vmem:[%s3 + $0x14] sm:$0xf]
    %v289 = vld [vmem:[%s3 + $0x18] sm:$0xf]
    %v290 = vld [vmem:[%s3 + $0x1c] sm:$0xf]
    %v291 = vld [vmem:[%s3 + $0x20] sm:$0xf]
    %v292 = vld [vmem:[%s3 + $0x24] sm:$0xf]
    %v293 = vld [vmem:[%s3 + $0x28] sm:$0xf]
    %v294 = vld [vmem:[%s3 + $0x2c] sm:$0xf]
    %v295 = vld [vmem:[%s3 + $0x30] sm:$0xf]
    %v296 = vld [vmem:[%s3 + $0x34] sm:$0xf]
    %v297 = vld [vmem:[%s3 + $0x38] sm:$0xf]
    %v298 = vld [vmem:[%s3 + $0x3c] sm:$0xf]
    %v299 = vld [vmem:[%s4] sm:$0x1]
    %v301 = vlaneseq
    %v302 = vshrl.u32 %v301, 7
    %v303 = vsub.s32 0, %v302
    %v304 = vrot.slane %v299, %v303
    %v322 = vunpack.c.l.b16 %v283
    %v323 = vunpack.c.l.b16 %v284
    %v324 = vunpack.c.l.b16 %v285
    %v325 = vunpack.c.l.b16 %v286
    %v326 = vunpack.c.l.b16 %v287
    %v327 = vunpack.c.l.b16 %v288
    %v328 = vunpack.c.l.b16 %v289
    %v329 = vunpack.c.l.b16 %v290
    %v330 = vunpack.c.l.b16 %v291
    %v331 = vunpack.c.l.b16 %v292
    %v332 = vunpack.c.l.b16 %v293
    %v333 = vunpack.c.l.b16 %v294
    %v334 = vunpack.c.l.b16 %v295
    %v335 = vunpack.c.l.b16 %v296
    %v336 = vunpack.c.l.b16 %v297
    %v337 = vunpack.c.l.b16 %v298
    %v338 = vpack.c.b16 %v323, %v322
    %v339 = vpack.c.b16 %v325, %v324
    %v340 = vpack.c.b16 %v327, %v326
    %v341 = vpack.c.b16 %v329, %v328
    %v342 = vpack.c.b16 %v331, %v330
    %v343 = vpack.c.b16 %v333, %v332
    %v344 = vpack.c.b16 %v335, %v334
    %v345 = vpack.c.b16 %v337, %v336
    %354 = vmatprep.subr.bf16.mxu0 0
    %355 = vmatpush1.bf16.msra.mxu0 %v338
    %356 = vmatprep.subr.bf16.mxu0 0
    %357 = vmatpush1.bf16.msra.mxu0 %v339
    %358 = vmatprep.subr.bf16.mxu0 0
    %359 = vmatpush1.bf16.msra.mxu0 %v340
    %360 = vmatprep.subr.bf16.mxu0 0
    %361 = vmatpush1.bf16.msra.mxu0 %v341
    %362 = vmatprep.subr.bf16.mxu0 0
    %363 = vmatpush1.bf16.msra.mxu0 %v342
    %364 = vmatprep.subr.bf16.mxu0 0
    %365 = vmatpush1.bf16.msra.mxu0 %v343
    %366 = vmatprep.subr.bf16.mxu0 0
    %367 = vmatpush1.bf16.msra.mxu0 %v344
    %368 = vmatprep.subr.bf16.mxu0 0
    %369 = vmatpush1.bf16.msra.mxu0 %v345
    %370 = vmatprep.subr.bf16.mxu0 0
    %371 = vmatpush1.bf16.msra.mxu0 0
    %372 = vmatprep.subr.bf16.mxu0 0
    %373 = vmatpush1.bf16.msra.mxu0 0
    %374 = vmatprep.subr.bf16.mxu0 0
    %375 = vmatpush1.bf16.msra.mxu0 0
    %376 = vmatprep.subr.bf16.mxu0 0
    %377 = vmatpush1.bf16.msra.mxu0 0
    %378 = vmatprep.subr.bf16.mxu0 0
    %379 = vmatpush1.bf16.msra.mxu0 0
    %380 = vmatprep.subr.bf16.mxu0 0
    %381 = vmatpush1.bf16.msra.mxu0 0
    %382 = vmatprep.subr.bf16.mxu0 0
    %383 = vmatpush1.bf16.msra.mxu0 0
    %384 = vmatprep.subr.bf16.mxu0 0
    %385 = vmatpush1.bf16.msra.mxu0 0
    %386 = vmatprep.mubr.bf16.mxu0 0
    %387 = vmatmul.mubr.bf16.gmra.mrb[0].mxu0 %v275
    %v388 = vpop.f32.mrb[0].mxu0
    %v389 = vadd.f32 %v304, %v388
    %v390 = vpop.f32.mrb[0].mxu0
    %v391 = vpop.f32.mrb[0].mxu0
    %v392 = vadd.f32 %v304, %v391
    %v393 = vpop.f32.mrb[0].mxu0
    %394 = vmatprep.mubr.bf16.mxu0 0
    %395 = vmatmul.mubr.bf16.gmra.mrb[0].mxu0 %v276
    %v396 = vpop.f32.mrb[0].mxu0
    %v397 = vadd.f32 %v304, %v396
    %v398 = vpop.f32.mrb[0].mxu0
    %v399 = vpop.f32.mrb[0].mxu0
    %v400 = vadd.f32 %v304, %v399
    %v401 = vpop.f32.mrb[0].mxu0
    %402 = vmatprep.mubr.bf16.mxu0 0
    %403 = vmatmul.mubr.bf16.gmra.mrb[0].mxu0 %v277
    %v404 = vpop.f32.mrb[0].mxu0
    %v405 = vadd.f32 %v304, %v404
    %v406 = vpop.f32.mrb[0].mxu0
    %v407 = vpop.f32.mrb[0].mxu0
    %v408 = vadd.f32 %v304, %v407
    %v409 = vpop.f32.mrb[0].mxu0
    %410 = vmatprep.mubr.bf16.mxu0 0
    %411 = vmatmul.mubr.bf16.gmra.mrb[0].mxu0 %v278
    %v412 = vpop.f32.mrb[0].mxu0
    %v413 = vadd.f32 %v304, %v412
    %v414 = vpop.f32.mrb[0].mxu0
    %v415 = vpop.f32.mrb[0].mxu0
    %v416 = vadd.f32 %v304, %v415
    %v417 = vpop.f32.mrb[0].mxu0
    %418 = vmatprep.mubr.bf16.mxu0 0
    %419 = vmatmul.mubr.bf16.gmra.mrb[0].mxu0 %v279
    %v420 = vpop.f32.mrb[0].mxu0
    %v421 = vadd.f32 %v304, %v420
    %v422 = vpop.f32.mrb[0].mxu0
    %v423 = vpop.f32.mrb[0].mxu0
    %v424 = vadd.f32 %v304, %v423
    %v425 = vpop.f32.mrb[0].mxu0
    %426 = vmatprep.mubr.bf16.mxu0 0
    %427 = vmatmul.mubr.bf16.gmra.mrb[0].mxu0 %v280
    %v428 = vpop.f32.mrb[0].mxu0
    %v429 = vadd.f32 %v304, %v428
    %v430 = vpop.f32.mrb[0].mxu0
    %v431 = vpop.f32.mrb[0].mxu0
    %v432 = vadd.f32 %v304, %v431
    %v433 = vpop.f32.mrb[0].mxu0
    %434 = vmatprep.mubr.bf16.mxu0 0
    %435 = vmatmul.mubr.bf16.gmra.mrb[0].mxu0 %v281
    %v436 = vpop.f32.mrb[0].mxu0
    %v437 = vadd.f32 %v304, %v436
    %v438 = vpop.f32.mrb[0].mxu0
    %v439 = vpop.f32.mrb[0].mxu0
    %v440 = vadd.f32 %v304, %v439
    %v441 = vpop.f32.mrb[0].mxu0
    %442 = vmatprep.mubr.bf16.mxu0 0
    %443 = vmatmul.mubr.bf16.gmra.mrb[0].mxu0 %v282
    %v444 = vpop.f32.mrb[0].mxu0
    %v445 = vadd.f32 %v304, %v444
    %v446 = vpop.f32.mrb[0].mxu0
    %v447 = vpop.f32.mrb[0].mxu0
    %v448 = vadd.f32 %v304, %v447
    %v449 = vpop.f32.mrb[0].mxu0
    %450 = vdwg.mxu0
    %v451 = vmax.f32 %v389, 0.0
    %v452 = vmax.f32 %v392, 0.0
    %v453 = vmax.f32 %v397, 0.0
    %v454 = vmax.f32 %v400, 0.0
    %v455 = vmax.f32 %v405, 0.0
    %v456 = vmax.f32 %v408, 0.0
    %v457 = vmax.f32 %v413, 0.0
    %v458 = vmax.f32 %v416, 0.0
    %v459 = vmax.f32 %v421, 0.0
    %v460 = vmax.f32 %v424, 0.0
    %v461 = vmax.f32 %v429, 0.0
    %v462 = vmax.f32 %v432, 0.0
    %v463 = vmax.f32 %v437, 0.0
    %v464 = vmax.f32 %v440, 0.0
    %v465 = vmax.f32 %v445, 0.0
    %v466 = vmax.f32 %v448, 0.0
    %v467 = vpack.c.bf16 %v452, %v451
    %v468 = vpack.c.bf16 %v454, %v453
    %v469 = vpack.c.bf16 %v456, %v455
    %v470 = vpack.c.bf16 %v458, %v457
    %v471 = vpack.c.bf16 %v460, %v459
    %v472 = vpack.c.bf16 %v462, %v461
    %v473 = vpack.c.bf16 %v464, %v463
    %v474 = vpack.c.bf16 %v466, %v465
    %v475 = vld [vmem:[#allocation2] sm:$0xf]
    %v476 = vld [vmem:[#allocation2 + $0x4] sm:$0xf]
    %v477 = vld [vmem:[#allocation2 + $0x8] sm:$0xf]
    %v478 = vld [vmem:[#allocation2 + $0xc] sm:$0xf]
    %v479 = vld [vmem:[#allocation2 + $0x10] sm:$0xf]
    %v480 = vld [vmem:[#allocation2 + $0x14] sm:$0xf]
    %v481 = vld [vmem:[#allocation2 + $0x18] sm:$0xf]
    %v482 = vld [vmem:[#allocation2 + $0x1c] sm:$0xf]
    %v483 = vld [vmem:[#allocation2 + $0x20] sm:$0xf]
    %v484 = vld [vmem:[#allocation2 + $0x24] sm:$0xf]
    %v485 = vld [vmem:[#allocation2 + $0x28] sm:$0xf]
    %v486 = vld [vmem:[#allocation2 + $0x2c] sm:$0xf]
    %v487 = vld [vmem:[#allocation2 + $0x30] sm:$0xf]
    %v488 = vld [vmem:[#allocation2 + $0x34] sm:$0xf]
    %v489 = vld [vmem:[#allocation2 + $0x38] sm:$0xf]
    %v490 = vld [vmem:[#allocation2 + $0x3c] sm:$0xf]
    %v491 = vld [vmem:[%s6] sm:$0x1]
    %v493 = vlaneseq
    %v494 = vshrl.u32 %v493, 7
    %v495 = vsub.s32 0, %v494
    %v496 = vrot.slane %v491, %v495
    %v514 = vunpack.c.l.b16 %v475
    %v515 = vunpack.c.l.b16 %v476
    %v516 = vunpack.c.l.b16 %v477
    %v517 = vunpack.c.l.b16 %v478
    %v518 = vunpack.c.l.b16 %v479
    %v519 = vunpack.c.l.b16 %v480
    %v520 = vunpack.c.l.b16 %v481
    %v521 = vunpack.c.l.b16 %v482
    %v522 = vunpack.c.l.b16 %v483
    %v523 = vunpack.c.l.b16 %v484
    %v524 = vunpack.c.l.b16 %v485
    %v525 = vunpack.c.l.b16 %v486
    %v526 = vunpack.c.l.b16 %v487
    %v527 = vunpack.c.l.b16 %v488
    %v528 = vunpack.c.l.b16 %v489
    %v529 = vunpack.c.l.b16 %v490
    %v530 = vpack.c.b16 %v515, %v514
    %v531 = vpack.c.b16 %v517, %v516
    %v532 = vpack.c.b16 %v519, %v518
    %v533 = vpack.c.b16 %v521, %v520
    %v534 = vpack.c.b16 %v523, %v522
    %v535 = vpack.c.b16 %v525, %v524
    %v536 = vpack.c.b16 %v527, %v526
    %v537 = vpack.c.b16 %v529, %v528
    %546 = vmatprep.subr.bf16.mxu0 0
    %547 = vmatpush1.bf16.msra.mxu0 %v530
    %548 = vmatprep.subr.bf16.mxu0 0
    %549 = vmatpush1.bf16.msra.mxu0 %v531
    %550 = vmatprep.subr.bf16.mxu0 0
    %551 = vmatpush1.bf16.msra.mxu0 %v532
    %552 = vmatprep.subr.bf16.mxu0 0
    %553 = vmatpush1.bf16.msra.mxu0 %v533
    %554 = vmatprep.subr.bf16.mxu0 0
    %555 = vmatpush1.bf16.msra.mxu0 %v534
    %556 = vmatprep.subr.bf16.mxu0 0
    %557 = vmatpush1.bf16.msra.mxu0 %v535
    %558 = vmatprep.subr.bf16.mxu0 0
    %559 = vmatpush1.bf16.msra.mxu0 %v536
    %560 = vmatprep.subr.bf16.mxu0 0
    %561 = vmatpush1.bf16.msra.mxu0 %v537
    %562 = vmatprep.subr.bf16.mxu0 0
    %563 = vmatpush1.bf16.msra.mxu0 0
    %564 = vmatprep.subr.bf16.mxu0 0
    %565 = vmatpush1.bf16.msra.mxu0 0
    %566 = vmatprep.subr.bf16.mxu0 0
    %567 = vmatpush1.bf16.msra.mxu0 0
    %568 = vmatprep.subr.bf16.mxu0 0
    %569 = vmatpush1.bf16.msra.mxu0 0
    %570 = vmatprep.subr.bf16.mxu0 0
    %571 = vmatpush1.bf16.msra.mxu0 0
    %572 = vmatprep.subr.bf16.mxu0 0
    %573 = vmatpush1.bf16.msra.mxu0 0
    %574 = vmatprep.subr.bf16.mxu0 0
    %575 = vmatpush1.bf16.msra.mxu0 0
    %576 = vmatprep.subr.bf16.mxu0 0
    %577 = vmatpush1.bf16.msra.mxu0 0
    %578 = vmatprep.mubr.bf16.mxu0 0
    %579 = vmatmul.mubr.bf16.gmra.mrb[0].mxu0 %v467
    %v580 = vpop.f32.mrb[0].mxu0
    %v581 = vadd.f32 %v496, %v580
    %v582 = vpop.f32.mrb[0].mxu0
    %v583 = vpop.f32.mrb[0].mxu0
    %v584 = vadd.f32 %v496, %v583
    %v585 = vpop.f32.mrb[0].mxu0
    %586 = vmatprep.mubr.bf16.mxu0 0
    %587 = vmatmul.mubr.bf16.gmra.mrb[0].mxu0 %v468
    %v588 = vpop.f32.mrb[0].mxu0
    %v589 = vadd.f32 %v496, %v588
    %v590 = vpop.f32.mrb[0].mxu0
    %v591 = vpop.f32.mrb[0].mxu0
    %v592 = vadd.f32 %v496, %v591
    %v593 = vpop.f32.mrb[0].mxu0
    %594 = vmatprep.mubr.bf16.mxu0 0
    %595 = vmatmul.mubr.bf16.gmra.mrb[0].mxu0 %v469
    %v596 = vpop.f32.mrb[0].mxu0
    %v597 = vadd.f32 %v496, %v596
    %v598 = vpop.f32.mrb[0].mxu0
    %v599 = vpop.f32.mrb[0].mxu0
    %v600 = vadd.f32 %v496, %v599
    %v601 = vpop.f32.mrb[0].mxu0
    %602 = vmatprep.mubr.bf16.mxu0 0
    %603 = vmatmul.mubr.bf16.gmra.mrb[0].mxu0 %v470
    %v604 = vpop.f32.mrb[0].mxu0
    %v605 = vadd.f32 %v496, %v604
    %v606 = vpop.f32.mrb[0].mxu0
    %v607 = vpop.f32.mrb[0].mxu0
    %v608 = vadd.f32 %v496, %v607
    %v609 = vpop.f32.mrb[0].mxu0
    %610 = vmatprep.mubr.bf16.mxu0 0
    %611 = vmatmul.mubr.bf16.gmra.mrb[0].mxu0 %v471
    %v612 = vpop.f32.mrb[0].mxu0
    %v613 = vadd.f32 %v496, %v612
    %v614 = vpop.f32.mrb[0].mxu0
    %v615 = vpop.f32.mrb[0].mxu0
    %v616 = vadd.f32 %v496, %v615
    %v617 = vpop.f32.mrb[0].mxu0
    %618 = vmatprep.mubr.bf16.mxu0 0
    %619 = vmatmul.mubr.bf16.gmra.mrb[0].mxu0 %v472
    %v620 = vpop.f32.mrb[0].mxu0
    %v621 = vadd.f32 %v496, %v620
    %v622 = vpop.f32.mrb[0].mxu0
    %v623 = vpop.f32.mrb[0].mxu0
    %v624 = vadd.f32 %v496, %v623
    %v625 = vpop.f32.mrb[0].mxu0
    %626 = vmatprep.mubr.bf16.mxu0 0
    %627 = vmatmul.mubr.bf16.gmra.mrb[0].mxu0 %v473
    %v628 = vpop.f32.mrb[0].mxu0
    %v629 = vadd.f32 %v496, %v628
    %v630 = vpop.f32.mrb[0].mxu0
    %v631 = vpop.f32.mrb[0].mxu0
    %v632 = vadd.f32 %v496, %v631
    %v633 = vpop.f32.mrb[0].mxu0
    %634 = vmatprep.mubr.bf16.mxu0 0
    %635 = vmatmul.mubr.bf16.gmra.mrb[0].mxu0 %v474
    %v636 = vpop.f32.mrb[0].mxu0
    %v637 = vadd.f32 %v496, %v636
    %v638 = vpop.f32.mrb[0].mxu0
    %v639 = vpop.f32.mrb[0].mxu0
    %v640 = vadd.f32 %v496, %v639
    %v641 = vpop.f32.mrb[0].mxu0
    %642 = vdwg.mxu0
    %643 = vst [vmem:[#allocation5] sm:$0xff] %v581
    %644 = vst [vmem:[#allocation5 + $0x8] sm:$0xff] %v584
    %645 = vst [vmem:[#allocation5 + $0x10] sm:$0xff] %v589
    %646 = vst [vmem:[#allocation5 + $0x18] sm:$0xff] %v592
    %647 = vst [vmem:[#allocation5 + $0x20] sm:$0xff] %v597
    %648 = vst [vmem:[#allocation5 + $0x28] sm:$0xff] %v600
    %649 = vst [vmem:[#allocation5 + $0x30] sm:$0xff] %v605
    %650 = vst [vmem:[#allocation5 + $0x38] sm:$0xff] %v608
    %651 = vst [vmem:[#allocation5 + $0x40] sm:$0xff] %v613
    %652 = vst [vmem:[#allocation5 + $0x48] sm:$0xff] %v616
    %653 = vst [vmem:[#allocation5 + $0x50] sm:$0xff] %v621
    %654 = vst [vmem:[#allocation5 + $0x58] sm:$0xff] %v624
    %655 = vst [vmem:[#allocation5 + $0x60] sm:$0xff] %v629
    %656 = vst [vmem:[#allocation5 + $0x68] sm:$0xff] %v632
    %657 = vst [vmem:[#allocation5 + $0x70] sm:$0xff] %v637
    %658 = vst [vmem:[#allocation5 + $0x78] sm:$0xff] %v640
    // Predicated region
    $region34: #{tpu_custom_call.1} parent=1 // pred_check
      _
    $region35: #{tpu_custom_call.1} parent=1 // pred_check_branch
      %660 = sbr.rel (0) target = $region37
    $region36: #{tpu_custom_call.1} parent=1 // pred_region
      %s662 = ssub.s32 2048, 2048
      %663 = vsyncadd [#allocation4], %s662
      %s664 = sshll.u32 [#allocation5], 4
      %s665 = int_to_ptr.vmem [resolvable:$true] %s664
      %670 = dma.vmem_to_hbm [thread:$0]  %s665, 2048, %s7, [#allocation4], 128, 128, 8
    $region37: #{tpu_custom_call.1} parent=1 // pred_fallthru
      _
    // Predicated region
    $region38: #{tpu_custom_call.1} parent=1 // pred_check
      _
    $region39: #{tpu_custom_call.1} parent=1 // pred_check_branch
      %672 = sbr.rel (0) target = $region41
    $region40: #{tpu_custom_call.1} parent=1 // pred_region
      %673 = dma.done [#allocation4], 2048
    $region41: #{tpu_custom_call.1} parent=1 // pred_fallthru
      _
    %674 = vsyncpa [#allocation3], 1
    %675 = vsyncpa [#allocation4], 1

</llo_original>
